<compile_context>
chip_gen: v6e
topology: v6e:2x2x1
jax: 0.10.0
libtpu: 0.0.40
codegen_flags: <defaults>
</compile_context>

<pallas_src>
import functools

import jax
import jax.numpy as jnp
from jax.experimental import pallas as pl
from jax.experimental.pallas import tpu as pltpu


def _round_up(a, b):
    return (a + b - 1) // b * b


def _vmem_capacity_bytes():
    try:
        cap = getattr(pltpu.get_tpu_info(), "vmem_capacity_bytes", None)
        if cap:
            return int(cap)
    except Exception:  # pragma: no cover - conservative fallback
        pass
    try:
        kind = jax.devices()[0].device_kind.lower()
    except Exception:  # pragma: no cover
        kind = ""
    if "v7" in kind or "7x" in kind:
        return 64 * 1024 * 1024
    return 128 * 1024 * 1024  # v5e / v6e


# --------------------------------------------------------------------------
# Fused single-pass kernel: (TB, C, HW) planes per grid step, no HBM padding.
# --------------------------------------------------------------------------
def _fused_kernel(x_ref, w1_ref, w2_ref, bns_ref, bnb_ref, o_ref, *, hw_valid):
    tb, c, _ = x_ref.shape
    inv_hw = jnp.float32(1.0 / hw_valid)

    # Pool each batch element straight from the ref; never hold the full tile.
    avg_cols = []
    max_cols = []
    for i in range(tb):                                    # static unroll (TB small)
        xi = x_ref[i]                                      # (C, HW)
        avg_cols.append(
            jnp.sum(xi, axis=1, keepdims=True, dtype=jnp.float32) * inv_hw)
        max_cols.append(
            jnp.max(xi, axis=1, keepdims=True).astype(jnp.float32))

    # Pack all avg columns then all max columns into one (C, 2*TB) RHS.
    col = jax.lax.broadcasted_iota(jnp.int32, (c, 2 * tb), 1)
    pooled = jnp.zeros((c, 2 * tb), jnp.float32)
    for i in range(tb):
        pooled = jnp.where(col == i, avg_cols[i], pooled)
        pooled = jnp.where(col == tb + i, max_cols[i], pooled)

    # Shared MLP: ONE pair of matmuls for all 2*TB columns (scale folded in w2).
    h = jnp.dot(w1_ref[...], pooled, preferred_element_type=jnp.float32)  # (Cr, 2TB)
    h = jnp.maximum(h * bns_ref[...] + bnb_ref[...], 0.0)                 # BN + ReLU
    out = jnp.dot(w2_ref[...], h, preferred_element_type=jnp.float32)     # (C, 2TB)
    attn = jax.nn.sigmoid(out[:, :tb] + out[:, tb:])                      # (C, TB)

    # Rescale: re-read x_ref (vld slots are cheap), lane-broadcast (C, 1) gate.
    for i in range(tb):
        gate = attn[:, i:i + 1].astype(o_ref.dtype)        # (C, 1)
        o_ref[i] = x_ref[i] * gate


# --------------------------------------------------------------------------
# Tiled two-pass path (large feature maps / small VMEM, e.g. v7x):
# pass A pools + gates, pass B rescales.
# --------------------------------------------------------------------------
def _pool_attn_kernel(x_ref, w1_ref, w2_ref, bns_ref, bnb_ref, attn_ref,
                      sum_acc, max_acc, *, hw_valid, thw):
    hstep = pl.program_id(1)
    nh = pl.num_programs(1)

    @pl.when(hstep == 0)
    def _():
        sum_acc[...] = jnp.zeros_like(sum_acc)
        max_acc[...] = jnp.full_like(max_acc, -jnp.inf)

    xi = x_ref[0]                                          # (C, THW)
    # HBM pad (if any) is zero-filled -> contributes nothing to the sum.
    sum_acc[0] += jnp.sum(xi, axis=1, keepdims=True, dtype=jnp.float32)

    tail = hw_valid % thw
    if tail == 0:
        max_acc[0] = jnp.maximum(
            max_acc[0], jnp.max(xi, axis=1, keepdims=True).astype(jnp.float32))
    else:
        @pl.when(hstep < nh - 1)
        def _():
            max_acc[0] = jnp.maximum(
                max_acc[0],
                jnp.max(xi, axis=1, keepdims=True).astype(jnp.float32))

        @pl.when(hstep == nh - 1)
        def _():
            lane = jax.lax.broadcasted_iota(jnp.int32, xi.shape, 1)
            xm = jnp.where(lane < tail, xi, jnp.asarray(-jnp.inf, xi.dtype))
            max_acc[0] = jnp.maximum(
                max_acc[0],
                jnp.max(xm, axis=1, keepdims=True).astype(jnp.float32))

    @pl.when(hstep == nh - 1)
    def _():
        c = sum_acc.shape[1]
        avg = sum_acc[0] * jnp.float32(1.0 / hw_valid)     # (C, 1)
        mx = max_acc[0]                                    # (C, 1)
        col = jax.lax.broadcasted_iota(jnp.int32, (c, 2), 1)
        pooled = jnp.where(col == 0, avg, mx)              # (C, 2): [avg | max]
        h = jnp.dot(w1_ref[...], pooled, preferred_element_type=jnp.float32)
        h = jnp.maximum(h * bns_ref[...] + bnb_ref[...], 0.0)
        out = jnp.dot(w2_ref[...], h, preferred_element_type=jnp.float32)
        attn_ref[0] = jax.nn.sigmoid(jnp.sum(out, axis=1, keepdims=True))


def _rescale_kernel(x_ref, attn_ref, o_ref):
    o_ref[...] = x_ref[...] * attn_ref[...].astype(o_ref.dtype)


# --------------------------------------------------------------------------
# Wrapper
# --------------------------------------------------------------------------
def channel_attention(x, w1, w2, bn_gamma, bn_beta, bn_mean, bn_var,
                      *, scale_factor=1.0, eps=1e-5, max_block_bytes=None):
    """x: [B, C, H, W] (NCHW, matching the PyTorch module)."""
    B, C, H, W = x.shape
    Cr = w1.shape[0]
    HW = H * W
    itemsize = x.dtype.itemsize

    # Fold BN (inference) into scale/shift; fold scale_factor into W2; f32 cast.
    inv_std = 1.0 / jnp.sqrt(bn_var.astype(jnp.float32) + eps)
    bns = (bn_gamma.astype(jnp.float32) * inv_std).reshape(Cr, 1)
    bnb = (bn_beta.astype(jnp.float32)
           - bn_mean.astype(jnp.float32) * bn_gamma.astype(jnp.float32) * inv_std
           ).reshape(Cr, 1)
    w1f = w1.astype(jnp.float32)
    w2f = w2.astype(jnp.float32) * jnp.float32(scale_factor)
    weight_bytes = int((w1f.size + w2f.size + bns.size + bnb.size) * 4)

    # VMEM budget (block sizing) + explicit scoped-VMEM limit.
    vmem_cap = _vmem_capacity_bytes()
    block_budget = int(0.7 * vmem_cap)
    if max_block_bytes is not None:
        block_budget = min(block_budget, int(max_block_bytes))
    phys_guard = int(0.9 * vmem_cap)

    def vmem_limit_for(need_bytes):
        return int(min(phys_guard, max(2 * need_bytes, 32 * 1024 * 1024)))

    x_flat = x.reshape(B, C, HW)
    hw_lane = _round_up(HW, 128)          # VMEM lane padding (compiler-internal)
    bytes_x = B * C * HW * itemsize

    fused_need_1 = 4 * C * hw_lane * itemsize + weight_bytes  # TB=1, dbl-buffered

    if fused_need_1 <= block_budget:
        # ----- fused single-pass path (1 read + 1 write of x in HBM) -----
        chunk1 = C * hw_lane * itemsize
        min_blocks = 4 if B >= 4 else (2 if B >= 2 else 1)
        tb = 1
        for cand in range(2, min(B, 8) + 1):
            if B % cand:
                continue
            if (B // cand) < min_blocks:          # keep pipeline + megacore busy
                continue
            if 4 * cand * chunk1 + weight_bytes > block_budget:
                continue
            if cand * chunk1 > 8 * 1024 * 1024:   # cap DMA chunk ~8 MiB
                break
            tb = cand
            if tb * chunk1 >= 1 * 1024 * 1024:    # ~1 MiB chunk is already enough
                break

        need = 4 * tb * chunk1 + 2 * weight_bytes
        kernel = functools.partial(_fused_kernel, hw_valid=HW)
        cost = pl.CostEstimate(
            flops=int(B * (8 * C * Cr + 3 * C * HW)),
            transcendentals=int(B * C),
            bytes_accessed=int(2 * bytes_x + weight_bytes))
        out = pl.pallas_call(
            kernel,
            out_shape=jax.ShapeDtypeStruct((B, C, HW), x.dtype),
            grid_spec=pltpu.PrefetchScalarGridSpec(
                num_scalar_prefetch=0,
                grid=(B // tb,),
                in_specs=[
                    pl.BlockSpec((tb, C, HW), lambda b: (b, 0, 0)),
                    pl.BlockSpec((Cr, C), lambda b: (0, 0)),
                    pl.BlockSpec((C, Cr), lambda b: (0, 0)),
                    pl.BlockSpec((Cr, 1), lambda b: (0, 0)),
                    pl.BlockSpec((Cr, 1), lambda b: (0, 0)),
                ],
                out_specs=pl.BlockSpec((tb, C, HW), lambda b: (b, 0, 0)),
            ),
            compiler_params=pltpu.CompilerParams(
                dimension_semantics=("parallel",),
                vmem_limit_bytes=vmem_limit_for(need)),
            cost_estimate=cost,
        )(x_flat, w1f, w2f, bns, bnb)
        return out.reshape(B, C, H, W)

    # ----- tiled two-pass path (large HW / small VMEM, e.g. v7x) -----
    def pick_thw(buffers, live_copies):
        # `buffers`: pipeline buffer count; `live_copies`: in-kernel temporaries.
        thw = 128
        while thw * 2 <= hw_lane:
            blk = C * (thw * 2) * itemsize
            if buffers * blk + weight_bytes > block_budget:
                break
            if (buffers + live_copies) * blk + 2 * weight_bytes > phys_guard:
                break
            thw *= 2
        return thw

    thw_a = pick_thw(2, 2)    # pass A: input double-buffer only (tiny attn output)
    thw_b = pick_thw(4, 2)    # pass B: input + output double-buffer
    HWp = _round_up(HW, max(thw_a, thw_b))
    nh_a = HWp // thw_a
    nh_b = HWp // thw_b
    if HWp != HW:
        x_flat = jnp.pad(x_flat, ((0, 0), (0, 0), (0, HWp - HW)))

    need_a = 2 * C * thw_a * itemsize + 2 * weight_bytes + 2 * C * 4
    need_b = 4 * C * thw_b * itemsize + C * 4
    cost_a = pl.CostEstimate(
        flops=int(B * (8 * C * Cr + 2 * C * HW)),
        transcendentals=int(B * C),
        bytes_accessed=int(bytes_x + weight_bytes + B * C * 4))
    cost_b = pl.CostEstimate(
        flops=int(B * C * HW),
        transcendentals=0,
        bytes_accessed=int(2 * bytes_x + B * C * 4))

    kernel_a = functools.partial(_pool_attn_kernel, hw_valid=HW, thw=thw_a)
    attn = pl.pallas_call(
        kernel_a,
        out_shape=jax.ShapeDtypeStruct((B, C, 1), jnp.float32),
        grid_spec=pltpu.PrefetchScalarGridSpec(
            num_scalar_prefetch=0,
            grid=(B, nh_a),
            in_specs=[
                pl.BlockSpec((1, C, thw_a), lambda b, h: (b, 0, h)),
                pl.BlockSpec((Cr, C), lambda b, h: (0, 0)),
                pl.BlockSpec((C, Cr), lambda b, h: (0, 0)),
                pl.BlockSpec((Cr, 1), lambda b, h: (0, 0)),
                pl.BlockSpec((Cr, 1), lambda b, h: (0, 0)),
            ],
            out_specs=pl.BlockSpec((1, C, 1), lambda b, h: (b, 0, 0)),
            scratch_shapes=[pltpu.VMEM((1, C, 1), jnp.float32),
                            pltpu.VMEM((1, C, 1), jnp.float32)],
        ),
        compiler_params=pltpu.CompilerParams(
            dimension_semantics=("parallel", "arbitrary"),
            vmem_limit_bytes=vmem_limit_for(need_a)),
        cost_estimate=cost_a,
    )(x_flat, w1f, w2f, bns, bnb)

    out = pl.pallas_call(
        _rescale_kernel,
        out_shape=jax.ShapeDtypeStruct((B, C, HWp), x.dtype),
        grid_spec=pltpu.PrefetchScalarGridSpec(
            num_scalar_prefetch=0,
            grid=(B, nh_b),
            in_specs=[
                pl.BlockSpec((1, C, thw_b), lambda b, h: (b, 0, h)),
                pl.BlockSpec((1, C, 1), lambda b, h: (b, 0, 0)),
            ],
            out_specs=pl.BlockSpec((1, C, thw_b), lambda b, h: (b, 0, h)),
        ),
        compiler_params=pltpu.CompilerParams(
            dimension_semantics=("parallel", "parallel"),
            vmem_limit_bytes=vmem_limit_for(need_b)),
        cost_estimate=cost_b,
    )(x_flat, attn)

    if HWp != HW:
        out = out[:, :, :HW]
    return out.reshape(B, C, H, W)


# --------------------------------------------------------------------------
# Pure-JAX reference (matches the PyTorch module in eval mode)
# --------------------------------------------------------------------------
def _reference(x, w1, w2, bn_gamma, bn_beta, bn_mean, bn_var,
               *, scale_factor=1.0, eps=1e-5):
    avg = jnp.mean(x, axis=(2, 3))
    mx = jnp.max(x, axis=(2, 3))

    def mlp(v):
        h = v @ w1.T
        h = (h - bn_mean) / jnp.sqrt(bn_var + eps) * bn_gamma + bn_beta
        h = jnp.maximum(h, 0.0)
        return h @ w2.T

    out = mlp(avg) + mlp(mx)
    attn = jax.nn.sigmoid(out * scale_factor)
    return x * attn[:, :, None, None]


def _check(x, w1, w2, g, b, m, v, scale, **kw):
    out = channel_attention(x, w1, w2, g, b, m, v, scale_factor=scale, **kw)
    out = jax.block_until_ready(out)
    ref = _reference(x, w1, w2, g, b, m, v, scale_factor=scale)
    assert out.shape == x.shape
    err = float(jnp.max(jnp.abs(out - ref)))
    assert jnp.allclose(out, ref, atol=1e-5, rtol=1e-5), err


if __name__ == "__main__":
    key = jax.random.PRNGKey(0)

    def make(k, B, C, H, W, rr):
        Cr = C // rr
        kx, k1, k2, kg, kb, km, kv = jax.random.split(k, 7)
        x = jax.random.normal(kx, (B, C, H, W), dtype=jnp.float32)
        w1 = jax.random.normal(k1, (Cr, C), dtype=jnp.float32) * 0.1
        w2 = jax.random.normal(k2, (C, Cr), dtype=jnp.float32) * 0.1
        g = 1.0 + 0.1 * jax.random.normal(kg, (Cr,), dtype=jnp.float32)
        b = 0.1 * jax.random.normal(kb, (Cr,), dtype=jnp.float32)
        m = 0.1 * jax.random.normal(km, (Cr,), dtype=jnp.float32)
        v = 1.0 + 0.1 * jnp.abs(jax.random.normal(kv, (Cr,), dtype=jnp.float32))
        return x, w1, w2, g, b, m, v

    ka, kb_, kc = jax.random.split(key, 3)

    # 1) lane-aligned spatial (16x16): fused single-pass path, 2 parallel blocks.
    _check(*make(ka, 2, 64, 16, 16, 16), 1.5)

    # 2) non-aligned spatial (7x7): fused path, full-HW block, NO host pad/slice.
    _check(*make(kb_, 2, 32, 7, 7, 8), 0.75)

    # 3) force the HW-tiled two-pass (v7x-safe) path on a small shape.
    _check(*make(kc, 2, 64, 20, 20, 16), 1.0, max_block_bytes=200 * 1024)

    print("KERNEL_OK")
</pallas_src>

<mosaic_0001>
module attributes {stable_mosaic.version = 11 : i64} {
  func.func @_fused_kernel(%arg0: i32, %arg1: memref<1x64x256xf32, #tpu.memory_space<vmem>>, %arg2: memref<4x64xf32, #tpu.memory_space<vmem>>, %arg3: memref<64x4xf32, #tpu.memory_space<vmem>>, %arg4: memref<4x1xf32, #tpu.memory_space<vmem>>, %arg5: memref<4x1xf32, #tpu.memory_space<vmem>>, %arg6: memref<1x64x256xf32, #tpu.memory_space<vmem>>) attributes {dimension_semantics = [#tpu.dimension_semantics<parallel>], iteration_bounds = array<i64: 2>, scalar_prefetch = 0 : i64, scratch_operands = 0 : i64, tpu.core_type = #tpu.core_type<tc>, window_params = [{transform_indices = @transform_0, window_bounds = array<i64: 1, 64, 256>}, {pipeline_mode = #tpu.pipeline_mode<synchronous>, transform_indices = @transform_1, window_bounds = array<i64: 4, 64>}, {pipeline_mode = #tpu.pipeline_mode<synchronous>, transform_indices = @transform_2, window_bounds = array<i64: 64, 4>}, {pipeline_mode = #tpu.pipeline_mode<synchronous>, transform_indices = @transform_3, window_bounds = array<i64: 4, 1>}, {pipeline_mode = #tpu.pipeline_mode<synchronous>, transform_indices = @transform_4, window_bounds = array<i64: 4, 1>}, {transform_indices = @transform_5, window_bounds = array<i64: 1, 64, 256>}]} {
    %c0 = arith.constant 0 : index
    %c0_0 = arith.constant 0 : index
    %c0_1 = arith.constant 0 : index
    %0 = vector.load %arg1[%c0, %c0_0, %c0_1] : memref<1x64x256xf32, #tpu.memory_space<vmem>>, vector<1x64x256xf32>
    %1 = vector.shape_cast %0 : vector<1x64x256xf32> to vector<64x256xf32>
    %cst = arith.constant dense<0.000000e+00> : vector<64xf32>
    %2 = vector.multi_reduction <add>, %1, %cst [1] : vector<64x256xf32> to vector<64xf32>
    %3 = vector.shape_cast %2 : vector<64xf32> to vector<64x1xf32>
    %cst_2 = arith.constant 3.906250e-03 : f32
    %4 = vector.broadcast %cst_2 : f32 to vector<64x1xf32>
    %5 = arith.mulf %3, %4 : vector<64x1xf32>
    %cst_3 = arith.constant dense<0xFF800000> : vector<64xf32>
    %6 = vector.multi_reduction <maximumf>, %1, %cst_3 [1] : vector<64x256xf32> to vector<64xf32>
    %7 = vector.shape_cast %6 : vector<64xf32> to vector<64x1xf32>
    %8 = tpu.iota {dimensions = array<i32: 1>} : vector<64x2xi32>
    %cst_4 = arith.constant 0.000000e+00 : f32
    %9 = vector.broadcast %cst_4 : f32 to vector<64x2xf32>
    %c0_i32 = arith.constant 0 : i32
    %10 = vector.broadcast %c0_i32 : i32 to vector<64x2xi32>
    %11 = arith.cmpi eq, %8, %10 : vector<64x2xi32>
    %12 = vector.shape_cast %5 : vector<64x1xf32> to vector<64x1xf32>
    %13 = vector.broadcast %12 : vector<64x1xf32> to vector<64x2xf32>
    %14 = arith.select %11, %13, %9 : vector<64x2xi1>, vector<64x2xf32>
    %c1_i32 = arith.constant 1 : i32
    %15 = vector.broadcast %c1_i32 : i32 to vector<64x2xi32>
    %16 = arith.cmpi eq, %8, %15 : vector<64x2xi32>
    %17 = vector.shape_cast %7 : vector<64x1xf32> to vector<64x1xf32>
    %18 = vector.broadcast %17 : vector<64x1xf32> to vector<64x2xf32>
    %19 = arith.select %16, %18, %14 : vector<64x2xi1>, vector<64x2xf32>
    %c0_5 = arith.constant 0 : index
    %c0_6 = arith.constant 0 : index
    %20 = vector.load %arg2[%c0_5, %c0_6] : memref<4x64xf32, #tpu.memory_space<vmem>>, vector<4x64xf32>
    %cst_7 = arith.constant dense<0.000000e+00> : vector<4x2xf32>
    %21 = tpu.matmul %20, %19, %cst_7 {dimension_numbers = #tpu.dot_dimension_numbers<[1], [0], [0], [1], [0, 0, 1, 1], [], []>} : vector<4x64xf32>, vector<64x2xf32>, vector<4x2xf32> -> vector<4x2xf32>
    %c0_8 = arith.constant 0 : index
    %c0_9 = arith.constant 0 : index
    %22 = vector.load %arg4[%c0_8, %c0_9] : memref<4x1xf32, #tpu.memory_space<vmem>>, vector<4x1xf32>
    %23 = vector.broadcast %22 : vector<4x1xf32> to vector<4x2xf32>
    %24 = arith.mulf %21, %23 : vector<4x2xf32>
    %c0_10 = arith.constant 0 : index
    %c0_11 = arith.constant 0 : index
    %25 = vector.load %arg5[%c0_10, %c0_11] : memref<4x1xf32, #tpu.memory_space<vmem>>, vector<4x1xf32>
    %26 = vector.broadcast %25 : vector<4x1xf32> to vector<4x2xf32>
    %27 = arith.addf %24, %26 : vector<4x2xf32>
    %cst_12 = arith.constant 0.000000e+00 : f32
    %28 = vector.broadcast %cst_12 : f32 to vector<4x2xf32>
    %29 = arith.maximumf %27, %28 : vector<4x2xf32>
    %c0_13 = arith.constant 0 : index
    %c0_14 = arith.constant 0 : index
    %30 = vector.load %arg3[%c0_13, %c0_14] : memref<64x4xf32, #tpu.memory_space<vmem>>, vector<64x4xf32>
    %cst_15 = arith.constant dense<0.000000e+00> : vector<64x2xf32>
    %31 = tpu.matmul %30, %29, %cst_15 {dimension_numbers = #tpu.dot_dimension_numbers<[1], [0], [0], [1], [0, 0, 1, 1], [], []>} : vector<64x4xf32>, vector<4x2xf32>, vector<64x2xf32> -> vector<64x2xf32>
    %32 = vector.extract_strided_slice %31 {offsets = [0, 0], sizes = [64, 1], strides = [1, 1]} : vector<64x2xf32> to vector<64x1xf32>
    %33 = vector.extract_strided_slice %31 {offsets = [0, 1], sizes = [64, 1], strides = [1, 1]} : vector<64x2xf32> to vector<64x1xf32>
    %34 = arith.addf %32, %33 : vector<64x1xf32>
    %35 = arith.negf %34 : vector<64x1xf32>
    %36 = math.exp %35 : vector<64x1xf32>
    %cst_16 = arith.constant 1.000000e+00 : f32
    %37 = vector.broadcast %cst_16 : f32 to vector<64x1xf32>
    %38 = arith.addf %37, %36 : vector<64x1xf32>
    %39 = arith.divf %37, %38 : vector<64x1xf32>
    %c0_17 = arith.constant 0 : index
    %c0_18 = arith.constant 0 : index
    %c0_19 = arith.constant 0 : index
    %40 = vector.load %arg1[%c0_17, %c0_18, %c0_19] : memref<1x64x256xf32, #tpu.memory_space<vmem>>, vector<1x64x256xf32>
    %41 = vector.shape_cast %40 : vector<1x64x256xf32> to vector<64x256xf32>
    %42 = vector.broadcast %39 : vector<64x1xf32> to vector<64x256xf32>
    %43 = arith.mulf %41, %42 : vector<64x256xf32>
    %c0_20 = arith.constant 0 : index
    %c0_21 = arith.constant 0 : index
    %c0_22 = arith.constant 0 : index
    %44 = vector.load %arg6[%c0_20, %c0_21, %c0_22] : memref<1x64x256xf32, #tpu.memory_space<vmem>>, vector<1x64x256xf32>
    %45 = vector.shape_cast %44 : vector<1x64x256xf32> to vector<64x256xf32>
    %46 = vector.shape_cast %43 : vector<64x256xf32> to vector<1x64x256xf32>
    tpu.vector_store %arg6[%c0_20, %c0_21, %c0_22], %46 {strides = array<i32>} : memref<1x64x256xf32, #tpu.memory_space<vmem>>, vector<1x64x256xf32>,
    return
  }
  func.func @transform_0(%arg0: i32) -> (i32, i32, i32) {
    %c0_i32 = arith.constant 0 : i32
    %c0_i32_0 = arith.constant 0 : i32
    %c0_i32_1 = arith.constant 0 : i32
    return %arg0, %c0_i32, %c0_i32_0 : i32, i32, i32
  }
  func.func @transform_1(%arg0: i32) -> (i32, i32) {
    %c0_i32 = arith.constant 0 : i32
    %c0_i32_0 = arith.constant 0 : i32
    %c0_i32_1 = arith.constant 0 : i32
    return %c0_i32, %c0_i32_0 : i32, i32
  }
  func.func @transform_2(%arg0: i32) -> (i32, i32) {
    %c0_i32 = arith.constant 0 : i32
    %c0_i32_0 = arith.constant 0 : i32
    %c0_i32_1 = arith.constant 0 : i32
    return %c0_i32, %c0_i32_0 : i32, i32
  }
  func.func @transform_3(%arg0: i32) -> (i32, i32) {
    %c0_i32 = arith.constant 0 : i32
    %c0_i32_0 = arith.constant 0 : i32
    %c0_i32_1 = arith.constant 0 : i32
    return %c0_i32, %c0_i32_0 : i32, i32
  }
  func.func @transform_4(%arg0: i32) -> (i32, i32) {
    %c0_i32 = arith.constant 0 : i32
    %c0_i32_0 = arith.constant 0 : i32
    %c0_i32_1 = arith.constant 0 : i32
    return %c0_i32, %c0_i32_0 : i32, i32
  }
  func.func @transform_5(%arg0: i32) -> (i32, i32, i32) {
    %c0_i32 = arith.constant 0 : i32
    %c0_i32_0 = arith.constant 0 : i32
    %c0_i32_1 = arith.constant 0 : i32
    return %arg0, %c0_i32, %c0_i32_0 : i32, i32, i32
  }
}

</mosaic_0001>

<llo_original>
// kernel: tpu_custom_call.1
$region0: #{tpu_custom_call.1}
  #allocation0 [shape = 'u32[]', space=smem, size = 0x4, offset = 0x4, fixed_abs, tag = 'smem constant byte address 0x4 - core index']
  #allocation1 [shape = 'u32[144,128]{1,0:T(1,128)}', space=vmem, size = 0x12000, scoped, tag = 'internal scratch']
  %s0 = inlined_call_operand.hbm [shape: f32[2,64,256], index: 0, kind: input, shape index: {}]
  %s1 = inlined_call_operand.vmem [shape: f32[4,64], index: 1, kind: input, shape index: {}]
  %s2 = inlined_call_operand.vmem [shape: f32[64,4], index: 2, kind: input, shape index: {}]
  %s3 = inlined_call_operand.vmem [shape: f32[4,1], index: 3, kind: input, shape index: {}]
  %s4 = inlined_call_operand.vmem [shape: f32[4,1], index: 4, kind: input, shape index: {}]
  %s5 = inlined_call_operand.hbm [shape: f32[2,64,256], index: 5, kind: output, shape index: {}]
  %s6 = sld [smem:[#allocation0]]
  $region57: #{tpu_custom_call.1} parent=0
    _
  %s8 = ssub.s32 1, %s6
  %s9 = scalar_select 0, %s8, %s6
  $region1: #{tpu_custom_call.1} parent=0
    #allocation2 [shape = 'u8[131072]{0}', space=vmem, size = 0x20000, scoped, tag = 'input window, operand 0']
    #allocation3 [shape = 's32[2]{0}', space=sflag, size = 0x8, scoped, tag = 'scoped memory for tpu_custom_call.1']
    #allocation4 [shape = 's32[2]{0}', space=sflag, size = 0x8, scoped, tag = 'scoped memory for tpu_custom_call.1']
    #allocation5 [shape = 'u8[131072]{0}', space=vmem, size = 0x20000, scoped, tag = 'output window, operand 0']
    %10 = vsyncpa [#allocation3], 0
    %s11 = scalar_lea.sflag [#allocation3], 1
    %12 = vsyncpa %s11, 0
    %13 = vsyncpa [#allocation4], 0
    %s14 = scalar_lea.sflag [#allocation4], 1
    %15 = vsyncpa %s14, 0
    loop: start=0, step=1, limit=4
    $region2: #{tpu_custom_call.1} parent=1 // loop_pre_header
      _
    $region3: #{tpu_custom_call.1} parent=1 // loop_header
      %s17 = sphi 0, %s21
      %p18 = scmp.ge.s32.totalorder %s17, 4
      %s27 = sphi 0, %s29
      %s30 = sphi 0, %s27
      %s31 = sphi 0, %s30
      %s47 = sphi 0, %s31
      %s51 = sphi 0, %s51
      %s53 = sphi 0, %s51
      %s54 = sphi 0, %s53
      %s68 = sphi 0, %s54
      %s72 = sphi 0, %s72
      %s74 = sphi 0, %s72
      %s75 = sphi 0, %s74
      %s89 = sphi 0, %s75
      %s93 = sphi 0, %s93
      %s95 = sphi 0, %s93
      %s96 = sphi 0, %s95
      %s110 = sphi 0, %s96
      %s114 = sphi 0, %s114
      %s116 = sphi 0, %s114
      %s117 = sphi 0, %s116
      %s131 = sphi 0, %s117
      %s137 = sphi 0, %s139
      %s140 = sphi 0, %s137
      %s141 = sphi 0, %s140
      %s157 = sphi 0, %s141
    $region4: #{tpu_custom_call.1} parent=1 // loop_header_branch
      %20 = sbr.rel (%p18) target = $region8
    $region5: #{tpu_custom_call.1} parent=1 // loop_body
      %s22 = ssub.s32 %s17, 1
      %s23 = ssub.s32 %s17, 2
      %s24 = sadd.s32 %s17, 1
      %s25 = ssub.s32 %s17, %s24
      %p26 = scmp.eq.s32.totalorder %s25, 0
      %s28 = sadd.s32 %s27, 1
      %s29 = scalar_select %p26, %s27, %s28
      %p32 = pneg %p26
      %p33 = scmp.eq.s32.totalorder %s17, 1
      %p34 = por %p32, %p33
      %p35 = scmp.ne.s32.totalorder %s27, %s30
      %p36 = scmp.eq.s32.totalorder %s17, 0
      %p37 = por %p35, %p36
      %p38 = scmp.ne.s32.totalorder %s27, %s30
      %p39 = scmp.eq.s32.totalorder %s22, 1
      %p40 = por %p38, %p39
      %p41 = scmp.ne.s32.totalorder %s30, %s31
      %p42 = scmp.eq.s32.totalorder %s22, 0
      %p43 = por %p41, %p42
      %p44 = scmp.ne.s32.totalorder %s30, %s31
      %p45 = scmp.eq.s32.totalorder %s23, 1
      %p46 = por %p44, %p45
      %p48 = scmp.ne.s32.totalorder %s31, %s47
      %p49 = scmp.eq.s32.totalorder %s23, 0
      %p50 = por %p48, %p49
      %s52 = sadd.s32 %s51, 1
      %p55 = scmp.eq.s32.totalorder %s17, 1
      %p56 = scmp.ne.s32.totalorder %s51, %s53
      %p57 = scmp.eq.s32.totalorder %s17, 0
      %p58 = por %p56, %p57
      %p59 = scmp.ne.s32.totalorder %s51, %s53
      %p60 = scmp.eq.s32.totalorder %s22, 1
      %p61 = por %p59, %p60
      %p62 = scmp.ne.s32.totalorder %s53, %s54
      %p63 = scmp.eq.s32.totalorder %s22, 0
      %p64 = por %p62, %p63
      %p65 = scmp.ne.s32.totalorder %s53, %s54
      %p66 = scmp.eq.s32.totalorder %s23, 1
      %p67 = por %p65, %p66
      %p69 = scmp.ne.s32.totalorder %s54, %s68
      %p70 = scmp.eq.s32.totalorder %s23, 0
      %p71 = por %p69, %p70
      %s73 = sadd.s32 %s72, 1
      %p76 = scmp.eq.s32.totalorder %s17, 1
      %p77 = scmp.ne.s32.totalorder %s72, %s74
      %p78 = scmp.eq.s32.totalorder %s17, 0
      %p79 = por %p77, %p78
      %p80 = scmp.ne.s32.totalorder %s72, %s74
      %p81 = scmp.eq.s32.totalorder %s22, 1
      %p82 = por %p80, %p81
      %p83 = scmp.ne.s32.totalorder %s74, %s75
      %p84 = scmp.eq.s32.totalorder %s22, 0
      %p85 = por %p83, %p84
      %p86 = scmp.ne.s32.totalorder %s74, %s75
      %p87 = scmp.eq.s32.totalorder %s23, 1
      %p88 = por %p86, %p87
      %p90 = scmp.ne.s32.totalorder %s75, %s89
      %p91 = scmp.eq.s32.totalorder %s23, 0
      %p92 = por %p90, %p91
      %s94 = sadd.s32 %s93, 1
      %p97 = scmp.eq.s32.totalorder %s17, 1
      %p98 = scmp.ne.s32.totalorder %s93, %s95
      %p99 = scmp.eq.s32.totalorder %s17, 0
      %p100 = por %p98, %p99
      %p101 = scmp.ne.s32.totalorder %s93, %s95
      %p102 = scmp.eq.s32.totalorder %s22, 1
      %p103 = por %p101, %p102
      %p104 = scmp.ne.s32.totalorder %s95, %s96
      %p105 = scmp.eq.s32.totalorder %s22, 0
      %p106 = por %p104, %p105
      %p107 = scmp.ne.s32.totalorder %s95, %s96
      %p108 = scmp.eq.s32.totalorder %s23, 1
      %p109 = por %p107, %p108
      %p111 = scmp.ne.s32.totalorder %s96, %s110
      %p112 = scmp.eq.s32.totalorder %s23, 0
      %p113 = por %p111, %p112
      %s115 = sadd.s32 %s114, 1
      %p118 = scmp.eq.s32.totalorder %s17, 1
      %p119 = scmp.ne.s32.totalorder %s114, %s116
      %p120 = scmp.eq.s32.totalorder %s17, 0
      %p121 = por %p119, %p120
      %p122 = scmp.ne.s32.totalorder %s114, %s116
      %p123 = scmp.eq.s32.totalorder %s22, 1
      %p124 = por %p122, %p123
      %p125 = scmp.ne.s32.totalorder %s116, %s117
      %p126 = scmp.eq.s32.totalorder %s22, 0
      %p127 = por %p125, %p126
      %p128 = scmp.ne.s32.totalorder %s116, %s117
      %p129 = scmp.eq.s32.totalorder %s23, 1
      %p130 = por %p128, %p129
      %p132 = scmp.ne.s32.totalorder %s117, %s131
      %p133 = scmp.eq.s32.totalorder %s23, 0
      %p134 = por %p132, %p133
      %s135 = ssub.s32 %s17, %s24
      %p136 = scmp.eq.s32.totalorder %s135, 0
      %s138 = sadd.s32 %s137, 1
      %s139 = scalar_select %p136, %s137, %s138
      %p142 = pneg %p136
      %p143 = scmp.eq.s32.totalorder %s17, 1
      %p144 = por %p142, %p143
      %p145 = scmp.ne.s32.totalorder %s137, %s140
      %p146 = scmp.eq.s32.totalorder %s17, 0
      %p147 = por %p145, %p146
      %p148 = scmp.ne.s32.totalorder %s137, %s140
      %p149 = scmp.eq.s32.totalorder %s22, 1
      %p150 = por %p148, %p149
      %p151 = scmp.ne.s32.totalorder %s140, %s141
      %p152 = scmp.eq.s32.totalorder %s22, 0
      %p153 = por %p151, %p152
      %p154 = scmp.ne.s32.totalorder %s140, %s141
      %p155 = scmp.eq.s32.totalorder %s23, 1
      %p156 = por %p154, %p155
      %p158 = scmp.ne.s32.totalorder %s141, %s157
      %p159 = scmp.eq.s32.totalorder %s23, 0
      %p160 = por %p158, %p159
      %p161 = scmp.le.s32.totalorder 1, %s17
      %p162 = scmp.lt.s32.totalorder %s17, 3
      %p163 = pnand %p161, %p162
      %p164 = pneg %p163
      // Predicated region
      $region9: #{tpu_custom_call.1} parent=5 // pred_check
        _
      $region10: #{tpu_custom_call.1} parent=5 // pred_check_branch
        %166 = sbr.rel (%p163) target = $region12
      $region11: #{tpu_custom_call.1} parent=5 // pred_region
        %s167 = ssub.s32 %s17, 1
        // Predicated region
        $region13: #{tpu_custom_call.1} parent=11 // pred_check
          %p168 = pneg %p64
        $region14: #{tpu_custom_call.1} parent=11 // pred_check_branch
          %170 = sbr.rel (%p168) target = $region16
        $region15: #{tpu_custom_call.1} parent=11 // pred_region
          _
        $region16: #{tpu_custom_call.1} parent=11 // pred_fallthru
          _
        // Predicated region
        $region17: #{tpu_custom_call.1} parent=11 // pred_check
          %p171 = pneg %p85
        $region18: #{tpu_custom_call.1} parent=11 // pred_check_branch
          %173 = sbr.rel (%p171) target = $region20
        $region19: #{tpu_custom_call.1} parent=11 // pred_region
          _
        $region20: #{tpu_custom_call.1} parent=11 // pred_fallthru
          _
        // Predicated region
        $region21: #{tpu_custom_call.1} parent=11 // pred_check
          %p174 = pneg %p106
        $region22: #{tpu_custom_call.1} parent=11 // pred_check_branch
          %176 = sbr.rel (%p174) target = $region24
        $region23: #{tpu_custom_call.1} parent=11 // pred_region
          _
        $region24: #{tpu_custom_call.1} parent=11 // pred_fallthru
          _
        // Predicated region
        $region25: #{tpu_custom_call.1} parent=11 // pred_check
          %p177 = pneg %p127
        $region26: #{tpu_custom_call.1} parent=11 // pred_check_branch
          %179 = sbr.rel (%p177) target = $region28
        $region27: #{tpu_custom_call.1} parent=11 // pred_region
          _
        $region28: #{tpu_custom_call.1} parent=11 // pred_fallthru
          _
      $region12: #{tpu_custom_call.1} parent=5 // pred_fallthru
        _
      %p180 = scmp.lt.s32.totalorder %s17, 2
      // Predicated region
      $region29: #{tpu_custom_call.1} parent=5 // pred_check
        %p181 = pneg %p180
      $region30: #{tpu_custom_call.1} parent=5 // pred_check_branch
        %183 = sbr.rel (%p181) target = $region32
      $region31: #{tpu_custom_call.1} parent=5 // pred_region
        // Predicated region
        $region33: #{tpu_custom_call.1} parent=31 // pred_check
          %p184 = pneg %p37
        $region34: #{tpu_custom_call.1} parent=31 // pred_check_branch
          %186 = sbr.rel (%p184) target = $region36
        $region35: #{tpu_custom_call.1} parent=31 // pred_region
          %s187 = sand.u32 %s27, 1
          %s188 = scalar_lea.sflag [#allocation3], %s187
          %s189 = sand.u32 %s27, 1
          %s190 = smul.addr %s189, 128
          %s191 = scalar_lea.vmem [#allocation2], %s190
          %s193 = ssub.s32 2048, 2048
          %194 = vsyncadd %s188, %s193
          %s195 = smul.addr %s17, 16
          %s196 = smul.addr %s195, 128
          %s197 = scalar_lea.hbm %s0, %s196
          %s198 = sshll.u32 %s191, 4
          %s199 = int_to_ptr.vmem [resolvable:$true] %s198
          %204 = dma.hbm_to_vmem [thread:$0]  %s197, 2048, %s199, %s188, 256, 256, 16
        $region36: #{tpu_custom_call.1} parent=31 // pred_fallthru
          _
      $region32: #{tpu_custom_call.1} parent=5 // pred_fallthru
        _
      %p205 = scmp.le.s32.totalorder 1, %s17
      %p206 = scmp.lt.s32.totalorder %s17, 3
      %p207 = pnand %p205, %p206
      %p208 = pneg %p207
      // Predicated region
      $region37: #{tpu_custom_call.1} parent=5 // pred_check
        _
      $region38: #{tpu_custom_call.1} parent=5 // pred_check_branch
        %210 = sbr.rel (%p207) target = $region40
      $region39: #{tpu_custom_call.1} parent=5 // pred_region
        %s211 = ssub.s32 %s17, 1
        %s212 = sand.u32 %s30, 1
        %s213 = scalar_lea.sflag [#allocation3], %s212
        %s214 = sand.u32 %s30, 1
        %s215 = smul.addr %s214, 128
        %s216 = scalar_lea.vmem [#allocation2], %s215
        // Predicated region
        $region41: #{tpu_custom_call.1} parent=39 // pred_check
          %p217 = pneg %p43
        $region42: #{tpu_custom_call.1} parent=39 // pred_check_branch
          %219 = sbr.rel (%p217) target = $region44
        $region43: #{tpu_custom_call.1} parent=39 // pred_region
          %220 = dma.done %s213, 2048
        $region44: #{tpu_custom_call.1} parent=39 // pred_fallthru
          _
        %s221 = sand.u32 %s30, 1
        %s222 = scalar_lea.sflag [#allocation3], %s221
        %s223 = sand.u32 %s30, 1
        %s224 = smul.addr %s223, 128
        %s225 = scalar_lea.vmem [#allocation2], %s224
        %p226 = pneg %p43
        %p227 = pneg %p40
        %p228 = pneg %p64
        %p229 = pneg %p61
        %p230 = pneg %p85
        %p231 = pneg %p82
        %p232 = pneg %p106
        %p233 = pneg %p103
        %p234 = pneg %p127
        %p235 = pneg %p124
        %p236 = pneg %p153
        %p237 = pneg %p150
        %s238 = sand.u32 %s140, 1
        %s239 = scalar_lea.sflag [#allocation4], %s238
        %s240 = sand.u32 %s140, 1
        %s241 = smul.addr %s240, 128
        %s242 = scalar_lea.vmem [#allocation5], %s241
        %v243 = vld [vmem:[%s216] sm:$0xff]
        %v244 = vld [vmem:[%s216 + $0x8] sm:$0xff]
        %v245 = vld [vmem:[%s216 + $0x10] sm:$0xff]
        %v246 = vld [vmem:[%s216 + $0x18] sm:$0xff]
        %v247 = vld [vmem:[%s216 + $0x20] sm:$0xff]
        %v248 = vld [vmem:[%s216 + $0x28] sm:$0xff]
        %v249 = vld [vmem:[%s216 + $0x30] sm:$0xff]
        %v250 = vld [vmem:[%s216 + $0x38] sm:$0xff]
        %v251 = vld [vmem:[%s216 + $0x40] sm:$0xff]
        %v252 = vld [vmem:[%s216 + $0x48] sm:$0xff]
        %v253 = vld [vmem:[%s216 + $0x50] sm:$0xff]
        %v254 = vld [vmem:[%s216 + $0x58] sm:$0xff]
        %v255 = vld [vmem:[%s216 + $0x60] sm:$0xff]
        %v256 = vld [vmem:[%s216 + $0x68] sm:$0xff]
        %v257 = vld [vmem:[%s216 + $0x70] sm:$0xff]
        %v258 = vld [vmem:[%s216 + $0x78] sm:$0xff]
        %v259 = vadd.f32 %v243, %v244
        %260 = vadd.xlane.f32.xlu0 %v259
        %v261 = vpop.xlane.xlu0 %260
        %v262 = vadd.f32 %v245, %v246
        %263 = vadd.xlane.f32.xlu0 %v262
        %v264 = vpop.xlane.xlu0 %263
        %v265 = vadd.f32 %v247, %v248
        %266 = vadd.xlane.f32.xlu0 %v265
        %v267 = vpop.xlane.xlu0 %266
        %v268 = vadd.f32 %v249, %v250
        %269 = vadd.xlane.f32.xlu0 %v268
        %v270 = vpop.xlane.xlu0 %269
        %v271 = vadd.f32 %v251, %v252
        %272 = vadd.xlane.f32.xlu0 %v271
        %v273 = vpop.xlane.xlu0 %272
        %v274 = vadd.f32 %v253, %v254
        %275 = vadd.xlane.f32.xlu0 %v274
        %v276 = vpop.xlane.xlu0 %275
        %v277 = vadd.f32 %v255, %v256
        %278 = vadd.xlane.f32.xlu0 %v277
        %v279 = vpop.xlane.xlu0 %278
        %v280 = vadd.f32 %v257, %v258
        %281 = vadd.xlane.f32.xlu0 %v280
        %v282 = vpop.xlane.xlu0 %281
        %v283 = vmul.f32 %v261, 0.00390625
        %v284 = vmul.f32 %v264, 0.00390625
        %v285 = vmul.f32 %v267, 0.00390625
        %v286 = vmul.f32 %v270, 0.00390625
        %v287 = vmul.f32 %v273, 0.00390625
        %v288 = vmul.f32 %v276, 0.00390625
        %v289 = vmul.f32 %v279, 0.00390625
        %v290 = vmul.f32 %v282, 0.00390625
        %v291 = vmax.f32 %v243, %v244
        %292 = vmax.xlane.f32.xlu0 %v291
        %v293 = vpop.xlane.xlu0 %292
        %v294 = vmax.f32 %v245, %v246
        %295 = vmax.xlane.f32.xlu0 %v294
        %v296 = vpop.xlane.xlu0 %295
        %v297 = vmax.f32 %v247, %v248
        %298 = vmax.xlane.f32.xlu0 %v297
        %v299 = vpop.xlane.xlu0 %298
        %v300 = vmax.f32 %v249, %v250
        %301 = vmax.xlane.f32.xlu0 %v300
        %v302 = vpop.xlane.xlu0 %301
        %v303 = vmax.f32 %v251, %v252
        %304 = vmax.xlane.f32.xlu0 %v303
        %v305 = vpop.xlane.xlu0 %304
        %v306 = vmax.f32 %v253, %v254
        %307 = vmax.xlane.f32.xlu0 %v306
        %v308 = vpop.xlane.xlu0 %307
        %v309 = vmax.f32 %v255, %v256
        %310 = vmax.xlane.f32.xlu0 %v309
        %v311 = vpop.xlane.xlu0 %310
        %v312 = vmax.f32 %v257, %v258
        %313 = vmax.xlane.f32.xlu0 %v312
        %v314 = vpop.xlane.xlu0 %313
        %v315 = vlaneseq
        %v316 = vand.u32 %v315, 127
        %vm317 = vcmp.eq.s32.totalorder %v316, 0
        %v318 = vsel %vm317, %v283, 0.0
        %v319 = vsel %vm317, %v284, 0.0
        %v320 = vsel %vm317, %v285, 0.0
        %v321 = vsel %vm317, %v286, 0.0
        %v322 = vsel %vm317, %v287, 0.0
        %v323 = vsel %vm317, %v288, 0.0
        %v324 = vsel %vm317, %v289, 0.0
        %v325 = vsel %vm317, %v290, 0.0
        %vm326 = vcmp.eq.s32.totalorder %v316, 1
        %v327 = vsel %vm326, %v293, %v318
        %v328 = vsel %vm326, %v296, %v319
        %v329 = vsel %vm326, %v299, %v320
        %v330 = vsel %vm326, %v302, %v321
        %v331 = vsel %vm326, %v305, %v322
        %v332 = vsel %vm326, %v308, %v323
        %v333 = vsel %vm326, %v311, %v324
        %v334 = vsel %vm326, %v314, %v325
        %v335 = vld [vmem:[%s1] sm:$0xf]
        %vm336 = vcmask 523264
        %v338 = vsel %vm336, %v335, 0
        %340 = vmatprep.subr.mxu0 0.0
        %341 = vmatpush1.msra.mxu0 0.0
        %342 = vmatprep.subr.mxu0 0.0
        %343 = vmatpush1.msra.mxu0 0.0
        %344 = vmatprep.subr.mxu0 0.0
        %345 = vmatpush1.msra.mxu0 0.0
        %346 = vmatprep.subr.mxu0 0.0
        %347 = vmatpush1.msra.mxu0 0.0
        %348 = vmatprep.subr.mxu0 0.0
        %349 = vmatpush1.msra.mxu0 0.0
        %350 = vmatprep.subr.mxu0 0.0
        %351 = vmatpush1.msra.mxu0 0.0
        %352 = vmatprep.subr.mxu0 0.0
        %353 = vmatpush1.msra.mxu0 0.0
        %354 = vmatprep.subr.mxu0 0.0
        %355 = vmatpush1.msra.mxu0 0.0
        %356 = vmatprep.subr.mxu0 0.0
        %357 = vmatpush1.msra.mxu0 %v334
        %358 = vmatprep.subr.mxu0 0.0
        %359 = vmatpush1.msra.mxu0 %v333
        %360 = vmatprep.subr.mxu0 0.0
        %361 = vmatpush1.msra.mxu0 %v332
        %362 = vmatprep.subr.mxu0 0.0
        %363 = vmatpush1.msra.mxu0 %v331
        %364 = vmatprep.subr.mxu0 0.0
        %365 = vmatpush1.msra.mxu0 %v330
        %366 = vmatprep.subr.mxu0 0.0
        %367 = vmatpush1.msra.mxu0 %v329
        %368 = vmatprep.subr.mxu0 0.0
        %369 = vmatpush1.msra.mxu0 %v328
        %370 = vmatprep.subr.mxu0 0.0
        %371 = vmatpush1.msra.mxu0 %v327
        %372 = vmatprep.subr.mxu0 0.0
        %373 = vmatpush2.msra.mxu0 0.0
        %374 = vmatprep.subr.mxu0 0.0
        %375 = vmatpush2.msra.mxu0 0.0
        %376 = vmatprep.subr.mxu0 0.0
        %377 = vmatpush2.msra.mxu0 0.0
        %378 = vmatprep.subr.mxu0 0.0
        %379 = vmatpush2.msra.mxu0 0.0
        %380 = vmatprep.subr.mxu0 0.0
        %381 = vmatpush2.msra.mxu0 0.0
        %382 = vmatprep.subr.mxu0 0.0
        %383 = vmatpush2.msra.mxu0 0.0
        %384 = vmatprep.subr.mxu0 0.0
        %385 = vmatpush2.msra.mxu0 0.0
        %386 = vmatprep.subr.mxu0 0.0
        %387 = vmatpush2.msra.mxu0 0.0
        %388 = vmatprep.subr.mxu0 0.0
        %389 = vmatpush2.msra.mxu0 0.0
        %390 = vmatprep.subr.mxu0 0.0
        %391 = vmatpush2.msra.mxu0 0.0
        %392 = vmatprep.subr.mxu0 0.0
        %393 = vmatpush2.msra.mxu0 0.0
        %394 = vmatprep.subr.mxu0 0.0
        %395 = vmatpush2.msra.mxu0 0.0
        %396 = vmatprep.subr.mxu0 0.0
        %397 = vmatpush2.msra.mxu0 0.0
        %398 = vmatprep.subr.mxu0 0.0
        %399 = vmatpush2.msra.mxu0 0.0
        %400 = vmatprep.subr.mxu0 0.0
        %401 = vmatpush2.msra.mxu0 0.0
        %402 = vmatprep.subr.mxu0 0.0
        %403 = vmatpush2.msra.mxu0 0.0
        %404 = vmatprep.mubr.f32.mxu0 0.0
        %405 = vmatmul.mubr.f32.gmra.mxu0 %v338
        %v406 = vpop.f32.mrf.mxu0
        %v407 = vadd.f32 0.0, %v406
        %v408 = vpop.f32.mrf.mxu0
        %409 = vdwg.mxu0
        %v410 = vld [vmem:[%s3] sm:$0xf]
        %412 = vset.pattern.permute.xlu0 0
        %413 = vperm.xlu0 %412, %v410
        %v414 = vpop.permute.xlu0 %413
        %v416 = vmul.f32 %v407, %v414
        %v417 = vld [vmem:[%s4] sm:$0xf]
        %419 = vset.pattern.permute.xlu0 0
        %420 = vperm.xlu0 %419, %v417
        %v421 = vpop.permute.xlu0 %420
        %v423 = vadd.f32 %v416, %v421
        %v424 = vmax.f32 %v423, 0.0
        %v425 = vld [vmem:[%s2] sm:$0xff]
        %v426 = vld [vmem:[%s2 + $0x8] sm:$0xff]
        %v427 = vld [vmem:[%s2 + $0x10] sm:$0xff]
        %v428 = vld [vmem:[%s2 + $0x18] sm:$0xff]
        %v429 = vld [vmem:[%s2 + $0x20] sm:$0xff]
        %v430 = vld [vmem:[%s2 + $0x28] sm:$0xff]
        %v431 = vld [vmem:[%s2 + $0x30] sm:$0xff]
        %v432 = vld [vmem:[%s2 + $0x38] sm:$0xff]
        %vm433 = vcmask 31744
        %v435 = vsel %vm433, %v425, 0
        %v438 = vsel %vm433, %v426, 0
        %v441 = vsel %vm433, %v427, 0
        %v444 = vsel %vm433, %v428, 0
        %v447 = vsel %vm433, %v429, 0
        %v450 = vsel %vm433, %v430, 0
        %v453 = vsel %vm433, %v431, 0
        %v456 = vsel %vm433, %v432, 0
        %vm458 = vcmask 1043456
        %v460 = vsel %vm458, %v424, 0
        %462 = vmatprep.subr.mxu0 0.0
        %463 = vmatpush1.msra.mxu0 0.0
        %464 = vmatprep.subr.mxu0 0.0
        %465 = vmatpush1.msra.mxu0 0.0
        %466 = vmatprep.subr.mxu0 0.0
        %467 = vmatpush1.msra.mxu0 0.0
        %468 = vmatprep.subr.mxu0 0.0
        %469 = vmatpush1.msra.mxu0 0.0
        %470 = vmatprep.subr.mxu0 0.0
        %471 = vmatpush1.msra.mxu0 0.0
        %472 = vmatprep.subr.mxu0 0.0
        %473 = vmatpush1.msra.mxu0 0.0
        %474 = vmatprep.subr.mxu0 0.0
        %475 = vmatpush1.msra.mxu0 0.0
        %476 = vmatprep.subr.mxu0 0.0
        %477 = vmatpush1.msra.mxu0 0.0
        %478 = vmatprep.subr.mxu0 0.0
        %479 = vmatpush1.msra.mxu0 0.0
        %480 = vmatprep.subr.mxu0 0.0
        %481 = vmatpush1.msra.mxu0 0.0
        %482 = vmatprep.subr.mxu0 0.0
        %483 = vmatpush1.msra.mxu0 0.0
        %484 = vmatprep.subr.mxu0 0.0
        %485 = vmatpush1.msra.mxu0 0.0
        %486 = vmatprep.subr.mxu0 0.0
        %487 = vmatpush1.msra.mxu0 0.0
        %488 = vmatprep.subr.mxu0 0.0
        %489 = vmatpush1.msra.mxu0 0.0
        %490 = vmatprep.subr.mxu0 0.0
        %491 = vmatpush1.msra.mxu0 0.0
        %492 = vmatprep.subr.mxu0 0.0
        %493 = vmatpush1.msra.mxu0 %v460
        %494 = vmatprep.subr.mxu0 0.0
        %495 = vmatpush2.msra.mxu0 0.0
        %496 = vmatprep.subr.mxu0 0.0
        %497 = vmatpush2.msra.mxu0 0.0
        %498 = vmatprep.subr.mxu0 0.0
        %499 = vmatpush2.msra.mxu0 0.0
        %500 = vmatprep.subr.mxu0 0.0
        %501 = vmatpush2.msra.mxu0 0.0
        %502 = vmatprep.subr.mxu0 0.0
        %503 = vmatpush2.msra.mxu0 0.0
        %504 = vmatprep.subr.mxu0 0.0
        %505 = vmatpush2.msra.mxu0 0.0
        %506 = vmatprep.subr.mxu0 0.0
        %507 = vmatpush2.msra.mxu0 0.0
        %508 = vmatprep.subr.mxu0 0.0
        %509 = vmatpush2.msra.mxu0 0.0
        %510 = vmatprep.subr.mxu0 0.0
        %511 = vmatpush2.msra.mxu0 0.0
        %512 = vmatprep.subr.mxu0 0.0
        %513 = vmatpush2.msra.mxu0 0.0
        %514 = vmatprep.subr.mxu0 0.0
        %515 = vmatpush2.msra.mxu0 0.0
        %516 = vmatprep.subr.mxu0 0.0
        %517 = vmatpush2.msra.mxu0 0.0
        %518 = vmatprep.subr.mxu0 0.0
        %519 = vmatpush2.msra.mxu0 0.0
        %520 = vmatprep.subr.mxu0 0.0
        %521 = vmatpush2.msra.mxu0 0.0
        %522 = vmatprep.subr.mxu0 0.0
        %523 = vmatpush2.msra.mxu0 0.0
        %524 = vmatprep.subr.mxu0 0.0
        %525 = vmatpush2.msra.mxu0 0.0
        %526 = vmatprep.mubr.f32.mxu0 0.0
        %527 = vmatmul.mubr.f32.gmra.mxu0 %v435
        %v528 = vpop.f32.mrf.mxu0
        %v529 = vadd.f32 0.0, %v528
        %v530 = vpop.f32.mrf.mxu0
        %531 = vmatprep.mubr.f32.mxu0 0.0
        %532 = vmatmul.mubr.f32.gmra.mxu0 %v438
        %v533 = vpop.f32.mrf.mxu0
        %v534 = vadd.f32 0.0, %v533
        %v535 = vpop.f32.mrf.mxu0
        %536 = vmatprep.mubr.f32.mxu0 0.0
        %537 = vmatmul.mubr.f32.gmra.mxu0 %v441
        %v538 = vpop.f32.mrf.mxu0
        %v539 = vadd.f32 0.0, %v538
        %v540 = vpop.f32.mrf.mxu0
        %541 = vmatprep.mubr.f32.mxu0 0.0
        %542 = vmatmul.mubr.f32.gmra.mxu0 %v444
        %v543 = vpop.f32.mrf.mxu0
        %v544 = vadd.f32 0.0, %v543
        %v545 = vpop.f32.mrf.mxu0
        %546 = vmatprep.mubr.f32.mxu0 0.0
        %547 = vmatmul.mubr.f32.gmra.mxu0 %v447
        %v548 = vpop.f32.mrf.mxu0
        %v549 = vadd.f32 0.0, %v548
        %v550 = vpop.f32.mrf.mxu0
        %551 = vmatprep.mubr.f32.mxu0 0.0
        %552 = vmatmul.mubr.f32.gmra.mxu0 %v450
        %v553 = vpop.f32.mrf.mxu0
        %v554 = vadd.f32 0.0, %v553
        %v555 = vpop.f32.mrf.mxu0
        %556 = vmatprep.mubr.f32.mxu0 0.0
        %557 = vmatmul.mubr.f32.gmra.mxu0 %v453
        %v558 = vpop.f32.mrf.mxu0
        %v559 = vadd.f32 0.0, %v558
        %v560 = vpop.f32.mrf.mxu0
        %561 = vmatprep.mubr.f32.mxu0 0.0
        %562 = vmatmul.mubr.f32.gmra.mxu0 %v456
        %v563 = vpop.f32.mrf.mxu0
        %v564 = vadd.f32 0.0, %v563
        %v565 = vpop.f32.mrf.mxu0
        %566 = vdwg.mxu0
        %575 = vrot.lane.b32.xlu0 %v529, 127
        %v576 = vpop.permute.xlu0 %575
        %577 = vrot.lane.b32.xlu0 %v534, 127
        %v578 = vpop.permute.xlu0 %577
        %579 = vrot.lane.b32.xlu0 %v539, 127
        %v580 = vpop.permute.xlu0 %579
        %581 = vrot.lane.b32.xlu0 %v544, 127
        %v582 = vpop.permute.xlu0 %581
        %583 = vrot.lane.b32.xlu0 %v549, 127
        %v584 = vpop.permute.xlu0 %583
        %585 = vrot.lane.b32.xlu0 %v554, 127
        %v586 = vpop.permute.xlu0 %585
        %587 = vrot.lane.b32.xlu0 %v559, 127
        %v588 = vpop.permute.xlu0 %587
        %589 = vrot.lane.b32.xlu0 %v564, 127
        %v590 = vpop.permute.xlu0 %589
        %v599 = vadd.f32 %v529, %v576
        %v600 = vadd.f32 %v534, %v578
        %v601 = vadd.f32 %v539, %v580
        %v602 = vadd.f32 %v544, %v582
        %v603 = vadd.f32 %v549, %v584
        %v604 = vadd.f32 %v554, %v586
        %v605 = vadd.f32 %v559, %v588
        %v606 = vadd.f32 %v564, %v590
        %v607 = vxor.u32 %v599, 2147483648
        %v608 = vxor.u32 %v600, 2147483648
        %v609 = vxor.u32 %v601, 2147483648
        %v610 = vxor.u32 %v602, 2147483648
        %v611 = vxor.u32 %v603, 2147483648
        %v612 = vxor.u32 %v604, 2147483648
        %v613 = vxor.u32 %v605, 2147483648
        %v614 = vxor.u32 %v606, 2147483648
        %v615 = vmul.f32 %v607, 1.442695
        %v616 = vpow.pop %v615
        %v617 = vmul.f32 %v608, 1.442695
        %v618 = vpow.pop %v617
        %v619 = vmul.f32 %v609, 1.442695
        %v620 = vpow.pop %v619
        %v621 = vmul.f32 %v610, 1.442695
        %v622 = vpow.pop %v621
        %v623 = vmul.f32 %v611, 1.442695
        %v624 = vpow.pop %v623
        %v625 = vmul.f32 %v612, 1.442695
        %v626 = vpow.pop %v625
        %v627 = vmul.f32 %v613, 1.442695
        %v628 = vpow.pop %v627
        %v629 = vmul.f32 %v614, 1.442695
        %v630 = vpow.pop %v629
        %v631 = vadd.f32 %v616, 1.0
        %v632 = vadd.f32 %v618, 1.0
        %v633 = vadd.f32 %v620, 1.0
        %v634 = vadd.f32 %v622, 1.0
        %v635 = vadd.f32 %v624, 1.0
        %v636 = vadd.f32 %v626, 1.0
        %v637 = vadd.f32 %v628, 1.0
        %v638 = vadd.f32 %v630, 1.0
        %v639 = vrcp.pop %v631
        %v640 = vmul.f32 1.0, %v639
        %v641 = vrcp.pop %v632
        %v642 = vmul.f32 1.0, %v641
        %v643 = vrcp.pop %v633
        %v644 = vmul.f32 1.0, %v643
        %v645 = vrcp.pop %v634
        %v646 = vmul.f32 1.0, %v645
        %v647 = vrcp.pop %v635
        %v648 = vmul.f32 1.0, %v647
        %v649 = vrcp.pop %v636
        %v650 = vmul.f32 1.0, %v649
        %v651 = vrcp.pop %v637
        %v652 = vmul.f32 1.0, %v651
        %v653 = vrcp.pop %v638
        %v654 = vmul.f32 1.0, %v653
        %656 = vset.pattern.permute.xlu0 0
        %657 = vperm.xlu0 %656, %v640
        %v658 = vpop.permute.xlu0 %657
        %661 = vset.pattern.permute.xlu0 0
        %662 = vperm.xlu0 %661, %v642
        %v663 = vpop.permute.xlu0 %662
        %666 = vset.pattern.permute.xlu0 0
        %667 = vperm.xlu0 %666, %v644
        %v668 = vpop.permute.xlu0 %667
        %671 = vset.pattern.permute.xlu0 0
        %672 = vperm.xlu0 %671, %v646
        %v673 = vpop.permute.xlu0 %672
        %676 = vset.pattern.permute.xlu0 0
        %677 = vperm.xlu0 %676, %v648
        %v678 = vpop.permute.xlu0 %677
        %681 = vset.pattern.permute.xlu0 0
        %682 = vperm.xlu0 %681, %v650
        %v683 = vpop.permute.xlu0 %682
        %686 = vset.pattern.permute.xlu0 0
        %687 = vperm.xlu0 %686, %v652
        %v688 = vpop.permute.xlu0 %687
        %691 = vset.pattern.permute.xlu0 0
        %692 = vperm.xlu0 %691, %v654
        %v693 = vpop.permute.xlu0 %692
        %v695 = vmul.f32 %v243, %v658
        %v696 = vmul.f32 %v244, %v658
        %v697 = vmul.f32 %v245, %v663
        %v698 = vmul.f32 %v246, %v663
        %v699 = vmul.f32 %v247, %v668
        %v700 = vmul.f32 %v248, %v668
        %v701 = vmul.f32 %v249, %v673
        %v702 = vmul.f32 %v250, %v673
        %v703 = vmul.f32 %v251, %v678
        %v704 = vmul.f32 %v252, %v678
        %v705 = vmul.f32 %v253, %v683
        %v706 = vmul.f32 %v254, %v683
        %v707 = vmul.f32 %v255, %v688
        %v708 = vmul.f32 %v256, %v688
        %v709 = vmul.f32 %v257, %v693
        %v710 = vmul.f32 %v258, %v693
        %711 = vst [vmem:[%s242] sm:$0xff] %v695
        %712 = vst [vmem:[%s242 + $0x8] sm:$0xff] %v696
        %713 = vst [vmem:[%s242 + $0x10] sm:$0xff] %v697
        %714 = vst [vmem:[%s242 + $0x18] sm:$0xff] %v698
        %715 = vst [vmem:[%s242 + $0x20] sm:$0xff] %v699
        %716 = vst [vmem:[%s242 + $0x28] sm:$0xff] %v700
        %717 = vst [vmem:[%s242 + $0x30] sm:$0xff] %v701
        %718 = vst [vmem:[%s242 + $0x38] sm:$0xff] %v702
        %719 = vst [vmem:[%s242 + $0x40] sm:$0xff] %v703
        %720 = vst [vmem:[%s242 + $0x48] sm:$0xff] %v704
        %721 = vst [vmem:[%s242 + $0x50] sm:$0xff] %v705
        %722 = vst [vmem:[%s242 + $0x58] sm:$0xff] %v706
        %723 = vst [vmem:[%s242 + $0x60] sm:$0xff] %v707
        %724 = vst [vmem:[%s242 + $0x68] sm:$0xff] %v708
        %725 = vst [vmem:[%s242 + $0x70] sm:$0xff] %v709
        %726 = vst [vmem:[%s242 + $0x78] sm:$0xff] %v710
        %s727 = sand.u32 %s140, 1
        %s728 = scalar_lea.sflag [#allocation4], %s727
        %s729 = sand.u32 %s140, 1
        %s730 = smul.addr %s729, 128
        %s731 = scalar_lea.vmem [#allocation5], %s730
        // Predicated region
        $region45: #{tpu_custom_call.1} parent=39 // pred_check
          %p732 = pneg %p150
        $region46: #{tpu_custom_call.1} parent=39 // pred_check_branch
          %734 = sbr.rel (%p732) target = $region48
        $region47: #{tpu_custom_call.1} parent=39 // pred_region
          %s736 = ssub.s32 2048, 2048
          %737 = vsyncadd %s728, %s736
          %s738 = smul.addr %s22, 16
          %s739 = smul.addr %s738, 128
          %s740 = scalar_lea.hbm %s5, %s739
          %s741 = sshll.u32 %s731, 4
          %s742 = int_to_ptr.vmem [resolvable:$true] %s741
          %747 = dma.vmem_to_hbm [thread:$0]  %s742, 2048, %s740, %s728, 256, 256, 16
        $region48: #{tpu_custom_call.1} parent=39 // pred_fallthru
          _
      $region40: #{tpu_custom_call.1} parent=5 // pred_fallthru
        _
      %p748 = scmp.le.s32.totalorder 2, %s17
      // Predicated region
      $region49: #{tpu_custom_call.1} parent=5 // pred_check
        %p749 = pneg %p748
      $region50: #{tpu_custom_call.1} parent=5 // pred_check_branch
        %751 = sbr.rel (%p749) target = $region52
      $region51: #{tpu_custom_call.1} parent=5 // pred_region
        %s752 = ssub.s32 %s17, 2
        // Predicated region
        $region53: #{tpu_custom_call.1} parent=51 // pred_check
          %p753 = pneg %p156
        $region54: #{tpu_custom_call.1} parent=51 // pred_check_branch
          %755 = sbr.rel (%p753) target = $region56
        $region55: #{tpu_custom_call.1} parent=51 // pred_region
          %s756 = sand.u32 %s141, 1
          %s757 = scalar_lea.sflag [#allocation4], %s756
          %s758 = sand.u32 %s141, 1
          %s759 = smul.addr %s758, 128
          %s760 = scalar_lea.vmem [#allocation5], %s759
          %761 = dma.done %s757, 2048
        $region56: #{tpu_custom_call.1} parent=51 // pred_fallthru
          _
      $region52: #{tpu_custom_call.1} parent=5 // pred_fallthru
        _
    $region6: #{tpu_custom_call.1} parent=1 // loop_footer
      %s21 = sadd.s32 1, %s17
    $region7: #{tpu_custom_call.1} parent=1 // loop_footer_branch
      %16 = sbr.rel target = $region3
    $region8: #{tpu_custom_call.1} parent=1 // loop_exit
      _
    %762 = vsyncpa [#allocation3], 1
    %s763 = scalar_lea.sflag [#allocation3], 1
    %764 = vsyncpa %s763, 1
    %765 = vsyncpa [#allocation4], 1
    %s766 = scalar_lea.sflag [#allocation4], 1
    %767 = vsyncpa %s766, 1

</llo_original>
